<compile_context>
chip_gen: v7x
topology: tpu7x:2x2x1
jax: 0.10.0
libtpu: 0.0.40
codegen_flags: <defaults>
</compile_context>

<pallas_src>
import jax
import jax.numpy as jnp
from jax.experimental import pallas as pl
from jax.experimental.pallas import tpu as pltpu


LANE = 128  # vreg lane width; last dim of every block


def _round_up(x, m):
    return ((x + m - 1) // m) * m


def _sublane_multiple(dtype):
    """Native sublane multiple for a dtype: 8 (4B) / 16 (2B) / 32 (1B)."""
    its = jnp.dtype(dtype).itemsize
    return max(8, 32 // max(1, its))


def _default_tile_rows():
    """8192 rows (4 MiB f32 tile) by default; 4096 on v5e (16 MiB scoped VMEM)."""
    try:
        kind = jax.devices()[0].device_kind.lower()
    except Exception:
        return 4096
    if "v5 lite" in kind or "v5e" in kind or "v5litepod" in kind:
        return 4096
    return 8192


def _divide_no_nan_f32(m, y):
    """torch divide_no_nan semantics: NaN and +inf -> 0 (-inf left alone)."""
    w = m / y
    return jnp.where(jnp.isnan(w) | (w == jnp.inf), jnp.zeros_like(w), w)


def _make_mape_partial_kernel(tile_rows, rows_valid, ragged):
    def kernel(forecast_ref, target_ref, mask_ref, out_ref):
        # Inputs arrive in their native dtype; cast in-kernel (HBM traffic 1x).
        f = forecast_ref[...].astype(jnp.float32)
        y = target_ref[...].astype(jnp.float32)
        m = mask_ref[...].astype(jnp.float32)

        w = _divide_no_nan_f32(m, y)
        err = jnp.abs((f - y) * w)

        if ragged:
            # Tail rows of the final block are out-of-bounds (undefined VMEM
            # contents) -> mask them by global row index against the static
            # valid-row count.  jnp.where is a select, so garbage/NaN in the
            # masked lanes cannot leak into the sum.
            row0 = pl.program_id(0) * tile_rows
            rid = row0 + jax.lax.broadcasted_iota(
                jnp.int32, (tile_rows, LANE), 0)
            err = jnp.where(rid < rows_valid, err, jnp.zeros_like(err))

        # Reduce only down to a full (8, 128) tile: unmasked store, no
        # cross-sublane XLU reduce; the cheap final reduce is in the wrapper.
        out_ref[...] = jnp.sum(err.reshape(tile_rows // 8, 8, LANE), axis=0)

    return kernel


def mape_loss(insample, freq, forecast, target, mask, *, tile_rows=None):
    """Pallas implementation of mape_loss.forward. Returns a scalar f32."""
    del insample, freq  # unused by the reference forward
    assert forecast.shape == target.shape == mask.shape
    n = forecast.size  # true element count for the mean

    flat_f = forecast.reshape(-1)
    flat_y = target.reshape(-1)
    flat_m = mask.reshape(-1)

    rows_valid = n // LANE          # rows of the 128-aligned prefix
    n_main = rows_valid * LANE
    rem = n - n_main                # < 128 trailing elements (plain JAX)

    total = jnp.float32(0.0)

    if rows_valid > 0:
        # dtype-aware sublane multiple across the three inputs.
        sub_mult = max(_sublane_multiple(x.dtype)
                       for x in (forecast, target, mask))

        if tile_rows is None:
            tile_rows = _default_tile_rows()
        tile_rows = max(sub_mult, _round_up(int(tile_rows), sub_mult))

        # Keep double-buffered input tiles within ~24 MiB of VMEM.
        in_bytes_per_row = 2 * LANE * sum(
            jnp.dtype(x.dtype).itemsize for x in (forecast, target, mask))
        max_rows_vmem = max(
            sub_mult, ((24 << 20) // in_bytes_per_row) // sub_mult * sub_mult)
        tile_rows = min(tile_rows, max_rows_vmem)

        # Give megacore (v7x: 2 TCs) at least two parallel grid blocks
        # whenever the input is big enough.
        half_rows = _round_up(pl.cdiv(rows_valid, 2), sub_mult)
        tile_rows = max(sub_mult, min(tile_rows, half_rows))

        num_blocks = pl.cdiv(rows_valid, tile_rows)
        ragged = (rows_valid % tile_rows) != 0

        # Largest 128-aligned prefix; a no-op slice + free reshape when
        # n % 128 == 0 (the common case).
        f2d = flat_f[:n_main].reshape(rows_valid, LANE)
        y2d = flat_y[:n_main].reshape(rows_valid, LANE)
        m2d = flat_m[:n_main].reshape(rows_valid, LANE)

        in_bytes = n_main * sum(
            jnp.dtype(x.dtype).itemsize for x in (forecast, target, mask))
        out_bytes = num_blocks * 8 * LANE * 4
        vmem_limit = int(min(max(in_bytes_per_row * tile_rows + (4 << 20),
                                 16 << 20),
                             30 << 20))

        kernel = _make_mape_partial_kernel(tile_rows, rows_valid, ragged)

        in_spec = pl.BlockSpec((tile_rows, LANE), lambda i: (i, 0))
        partial = pl.pallas_call(
            kernel,
            out_shape=jax.ShapeDtypeStruct((num_blocks * 8, LANE), jnp.float32),
            grid=(num_blocks,),
            in_specs=[in_spec, in_spec, in_spec],
            out_specs=pl.BlockSpec((8, LANE), lambda i: (i, 0)),
            compiler_params=pltpu.CompilerParams(
                dimension_semantics=("parallel",),
                vmem_limit_bytes=vmem_limit),
            cost_estimate=pl.CostEstimate(
                flops=8 * n_main,
                transcendentals=0,
                bytes_accessed=in_bytes + out_bytes),
        )(f2d, y2d, m2d)

        total = total + jnp.sum(partial)

    if rem > 0:
        # Sub-128 remainder: tiny, reduce in plain JAX with identical math.
        rf = flat_f[n_main:].astype(jnp.float32)
        ry = flat_y[n_main:].astype(jnp.float32)
        rm = flat_m[n_main:].astype(jnp.float32)
        w = _divide_no_nan_f32(rm, ry)
        total = total + jnp.sum(jnp.abs((rf - ry) * w))

    return total / jnp.float32(n)


def _mape_reference(forecast, target, mask):
    """Pure-JAX reference for correctness checking (torch semantics)."""
    f = forecast.astype(jnp.float32)
    y = target.astype(jnp.float32)
    m = mask.astype(jnp.float32)
    w = _divide_no_nan_f32(m, y)
    return jnp.mean(jnp.abs((f - y) * w))


if __name__ == "__main__":
    key = jax.random.PRNGKey(0)
    kf, kt, km, ki, kf2, kt2, km2, kf3, kt3, km3 = jax.random.split(key, 10)

    insample = jax.random.normal(ki, (4, 64), dtype=jnp.float32)  # unused
    freq = 1                                                       # unused

    # --- test 1: f32 inputs, ragged total (n = 3232 -> 25 full rows + 32
    #     remainder), 2 grid blocks with an in-kernel masked tail, and the
    #     divide_no_nan +inf / NaN paths.
    B, T = 32, 101
    forecast = jax.random.normal(kf, (B, T), dtype=jnp.float32)
    target = jax.random.normal(kt, (B, T), dtype=jnp.float32)
    mask = (jax.random.uniform(km, (B, T)) > 0.3).astype(jnp.float32)
    target = target.at[:, :4].set(0.0)      # zero targets
    mask = mask.at[:, :2].set(1.0)          # -> +inf -> zeroed
    mask = mask.at[:, 2:4].set(0.0)         # -> NaN  -> zeroed

    loss = jax.block_until_ready(mape_loss(insample, freq, forecast, target, mask))
    ref = _mape_reference(forecast, target, mask)
    assert jnp.allclose(loss, ref, rtol=2e-5, atol=1e-5), (loss, ref)

    # --- test 2: bf16 forecast/target/mask (native-dtype streaming, sublane
    #     multiple 16), n = 24*336 = 8064 = 63*128 exactly (copy-free reshape),
    #     2 grid blocks with a masked ragged last block.
    B2, T2 = 24, 336
    f2 = jax.random.normal(kf2, (B2, T2), dtype=jnp.float32).astype(jnp.bfloat16)
    t2 = jax.random.normal(kt2, (B2, T2), dtype=jnp.float32).astype(jnp.bfloat16)
    m2 = (jax.random.uniform(km2, (B2, T2)) > 0.5).astype(jnp.bfloat16)
    t2 = t2.at[:, :2].set(0.0)
    m2 = m2.at[:, 0].set(1.0)               # +inf path
    m2 = m2.at[:, 1].set(0.0)               # NaN path

    loss2 = jax.block_until_ready(mape_loss(insample, freq, f2, t2, m2))
    ref2 = _mape_reference(f2, t2, m2)
    assert jnp.allclose(loss2, ref2, rtol=2e-5, atol=1e-5), (loss2, ref2)

    # --- test 3: tiny input (n < 128) exercises the pure-JAX remainder path.
    B3, T3 = 1, 40
    f3 = jax.random.normal(kf3, (B3, T3), dtype=jnp.float32)
    t3 = jax.random.normal(kt3, (B3, T3), dtype=jnp.float32)
    m3 = (jax.random.uniform(km3, (B3, T3)) > 0.5).astype(jnp.float32)

    loss3 = jax.block_until_ready(mape_loss(insample, freq, f3, t3, m3))
    ref3 = _mape_reference(f3, t3, m3)
    assert jnp.allclose(loss3, ref3, rtol=2e-5, atol=1e-5), (loss3, ref3)

    print("KERNEL_OK")
</pallas_src>

<mosaic_0001>
module attributes {stable_mosaic.version = 11 : i64} {
  func.func @kernel(%arg0: i32, %arg1: memref<16x128xf32, #tpu.memory_space<vmem>>, %arg2: memref<16x128xf32, #tpu.memory_space<vmem>>, %arg3: memref<16x128xf32, #tpu.memory_space<vmem>>, %arg4: memref<8x128xf32, #tpu.memory_space<vmem>>) attributes {dimension_semantics = [#tpu.dimension_semantics<parallel>], iteration_bounds = array<i64: 2>, scalar_prefetch = 0 : i64, scratch_operands = 0 : i64, tpu.core_type = #tpu.core_type<tc>, window_params = [{transform_indices = @transform_0, window_bounds = array<i64: 16, 128>}, {transform_indices = @transform_1, window_bounds = array<i64: 16, 128>}, {transform_indices = @transform_2, window_bounds = array<i64: 16, 128>}, {transform_indices = @transform_3, window_bounds = array<i64: 8, 128>}]} {
    %c0 = arith.constant 0 : index
    %c0_0 = arith.constant 0 : index
    %0 = vector.load %arg1[%c0, %c0_0] : memref<16x128xf32, #tpu.memory_space<vmem>>, vector<16x128xf32>
    %c0_1 = arith.constant 0 : index
    %c0_2 = arith.constant 0 : index
    %1 = vector.load %arg2[%c0_1, %c0_2] : memref<16x128xf32, #tpu.memory_space<vmem>>, vector<16x128xf32>
    %c0_3 = arith.constant 0 : index
    %c0_4 = arith.constant 0 : index
    %2 = vector.load %arg3[%c0_3, %c0_4] : memref<16x128xf32, #tpu.memory_space<vmem>>, vector<16x128xf32>
    %3 = arith.divf %2, %1 : vector<16x128xf32>
    %4 = arith.cmpf one, %3, %3 : vector<16x128xf32>
    %cst = arith.constant 0x7F800000 : f32
    %5 = vector.broadcast %cst : f32 to vector<16x128xf32>
    %6 = arith.cmpf oeq, %3, %5 : vector<16x128xf32>
    %7 = arith.ori %4, %6 : vector<16x128xi1>
    %cst_5 = arith.constant 0.000000e+00 : f32
    %8 = vector.broadcast %cst_5 : f32 to vector<16x128xf32>
    %9 = arith.select %7, %8, %3 : vector<16x128xi1>, vector<16x128xf32>
    %10 = arith.subf %0, %1 : vector<16x128xf32>
    %11 = arith.mulf %10, %9 : vector<16x128xf32>
    %12 = math.absf %11 : vector<16x128xf32>
    %c16_i32 = arith.constant 16 : i32
    %13 = arith.muli %arg0, %c16_i32 : i32
    %14 = tpu.iota {dimensions = array<i32: 0>} : vector<16x128xi32>
    %15 = vector.broadcast %13 : i32 to vector<16x128xi32>
    %16 = arith.addi %15, %14 : vector<16x128xi32>
    %c25_i32 = arith.constant 25 : i32
    %17 = vector.broadcast %c25_i32 : i32 to vector<16x128xi32>
    %18 = arith.cmpi slt, %16, %17 : vector<16x128xi32>
    %cst_6 = arith.constant 0.000000e+00 : f32
    %19 = vector.broadcast %cst_6 : f32 to vector<16x128xf32>
    %20 = arith.select %18, %12, %19 : vector<16x128xi1>, vector<16x128xf32>
    %21 = vector.shape_cast %20 : vector<16x128xf32> to vector<2x8x128xf32>
    %cst_7 = arith.constant dense<0.000000e+00> : vector<8x128xf32>
    %22 = vector.multi_reduction <add>, %21, %cst_7 [0] : vector<2x8x128xf32> to vector<8x128xf32>
    %c0_8 = arith.constant 0 : index
    %c0_9 = arith.constant 0 : index
    %23 = vector.load %arg4[%c0_8, %c0_9] : memref<8x128xf32, #tpu.memory_space<vmem>>, vector<8x128xf32>
    tpu.vector_store %arg4[%c0_8, %c0_9], %22 {strides = array<i32>} : memref<8x128xf32, #tpu.memory_space<vmem>>, vector<8x128xf32>,
    return
  }
  func.func @transform_0(%arg0: i32) -> (i32, i32) {
    %c0_i32 = arith.constant 0 : i32
    %c0_i32_0 = arith.constant 0 : i32
    return %arg0, %c0_i32 : i32, i32
  }
  func.func @transform_1(%arg0: i32) -> (i32, i32) {
    %c0_i32 = arith.constant 0 : i32
    %c0_i32_0 = arith.constant 0 : i32
    return %arg0, %c0_i32 : i32, i32
  }
  func.func @transform_2(%arg0: i32) -> (i32, i32) {
    %c0_i32 = arith.constant 0 : i32
    %c0_i32_0 = arith.constant 0 : i32
    return %arg0, %c0_i32 : i32, i32
  }
  func.func @transform_3(%arg0: i32) -> (i32, i32) {
    %c0_i32 = arith.constant 0 : i32
    %c0_i32_0 = arith.constant 0 : i32
    return %arg0, %c0_i32 : i32, i32
  }
}

</mosaic_0001>

<llo_original>
// kernel: tpu_custom_call.1
$region0: #{tpu_custom_call.1}
  #allocation0 [shape = 'u32[]', space=smem, size = 0x4, offset = 0x4, fixed_abs, tag = 'smem constant byte address 0x4 - core index']
  #allocation1 [shape = 'u32[144,128]{1,0:T(1,128)}', space=vmem, size = 0x12000, scoped, tag = 'internal scratch']
  %s0 = inlined_call_operand.hbm [shape: f32[25,128], index: 0, kind: input, shape index: {}]
  %s1 = inlined_call_operand.hbm [shape: f32[25,128], index: 1, kind: input, shape index: {}]
  %s2 = inlined_call_operand.hbm [shape: f32[25,128], index: 2, kind: input, shape index: {}]
  %s3 = inlined_call_operand.hbm [shape: f32[16,128], index: 3, kind: output, shape index: {}]
  %s4 = sld [smem:[#allocation0]]
  $region57: #{tpu_custom_call.1} parent=0
    _
  %s6 = ssub.s32 1, %s4
  %s7 = scalar_select 0, %s6, %s4
  $region1: #{tpu_custom_call.1} parent=0
    #allocation2 [shape = 'u8[16384]{0}', space=vmem, size = 0x4000, scoped, tag = 'input window, operand 0']
    #allocation3 [shape = 's32[2]{0}', space=sflag, size = 0x8, scoped, tag = 'scoped memory for tpu_custom_call.1']
    #allocation4 [shape = 's32[2]{0}', space=sflag, size = 0x8, scoped, tag = 'scoped memory for tpu_custom_call.1']
    #allocation5 [shape = 'u8[16384]{0}', space=vmem, size = 0x4000, scoped, tag = 'input window, operand 1']
    #allocation6 [shape = 's32[2]{0}', space=sflag, size = 0x8, scoped, tag = 'scoped memory for tpu_custom_call.1']
    #allocation7 [shape = 'u8[16384]{0}', space=vmem, size = 0x4000, scoped, tag = 'input window, operand 2']
    #allocation8 [shape = 'u8[8192]{0}', space=vmem, size = 0x2000, scoped, tag = 'output window, operand 0']
    %8 = vsyncpa [#allocation3], 0
    %s9 = scalar_lea.sflag [#allocation3], 1
    %10 = vsyncpa %s9, 0
    %11 = vsyncpa [#allocation6], 0
    %s12 = scalar_lea.sflag [#allocation6], 1
    %13 = vsyncpa %s12, 0
    %14 = vsyncpa [#allocation4], 0
    %s15 = scalar_lea.sflag [#allocation4], 1
    %16 = vsyncpa %s15, 0
    loop: start=0, step=1, limit=4
    $region2: #{tpu_custom_call.1} parent=1 // loop_pre_header
      _
    $region3: #{tpu_custom_call.1} parent=1 // loop_header
      %s18 = sphi 0, %s22
      %p19 = scmp.ge.s32.totalorder %s18, 4
      %s28 = sphi 0, %s30
      %s31 = sphi 0, %s28
      %s32 = sphi 0, %s31
      %s48 = sphi 0, %s32
      %s54 = sphi 0, %s56
      %s57 = sphi 0, %s54
      %s58 = sphi 0, %s57
      %s74 = sphi 0, %s58
      %s80 = sphi 0, %s82
      %s83 = sphi 0, %s80
      %s84 = sphi 0, %s83
      %s100 = sphi 0, %s84
      %s106 = sphi 0, %s108
      %s109 = sphi 0, %s106
      %s110 = sphi 0, %s109
      %s126 = sphi 0, %s110
    $region4: #{tpu_custom_call.1} parent=1 // loop_header_branch
      %21 = sbr.rel (%p19) target = $region8
    $region5: #{tpu_custom_call.1} parent=1 // loop_body
      %s23 = ssub.s32 %s18, 1
      %s24 = ssub.s32 %s18, 2
      %s25 = sadd.s32 %s18, 1
      %s26 = ssub.s32 %s18, %s25
      %p27 = scmp.eq.s32.totalorder %s26, 0
      %s29 = sadd.s32 %s28, 1
      %s30 = scalar_select %p27, %s28, %s29
      %p33 = pneg %p27
      %p34 = scmp.eq.s32.totalorder %s18, 1
      %p35 = por %p33, %p34
      %p36 = scmp.ne.s32.totalorder %s28, %s31
      %p37 = scmp.eq.s32.totalorder %s18, 0
      %p38 = por %p36, %p37
      %p39 = scmp.ne.s32.totalorder %s28, %s31
      %p40 = scmp.eq.s32.totalorder %s23, 1
      %p41 = por %p39, %p40
      %p42 = scmp.ne.s32.totalorder %s31, %s32
      %p43 = scmp.eq.s32.totalorder %s23, 0
      %p44 = por %p42, %p43
      %p45 = scmp.ne.s32.totalorder %s31, %s32
      %p46 = scmp.eq.s32.totalorder %s24, 1
      %p47 = por %p45, %p46
      %p49 = scmp.ne.s32.totalorder %s32, %s48
      %p50 = scmp.eq.s32.totalorder %s24, 0
      %p51 = por %p49, %p50
      %s52 = ssub.s32 %s18, %s25
      %p53 = scmp.eq.s32.totalorder %s52, 0
      %s55 = sadd.s32 %s54, 1
      %s56 = scalar_select %p53, %s54, %s55
      %p59 = pneg %p53
      %p60 = scmp.eq.s32.totalorder %s18, 1
      %p61 = por %p59, %p60
      %p62 = scmp.ne.s32.totalorder %s54, %s57
      %p63 = scmp.eq.s32.totalorder %s18, 0
      %p64 = por %p62, %p63
      %p65 = scmp.ne.s32.totalorder %s54, %s57
      %p66 = scmp.eq.s32.totalorder %s23, 1
      %p67 = por %p65, %p66
      %p68 = scmp.ne.s32.totalorder %s57, %s58
      %p69 = scmp.eq.s32.totalorder %s23, 0
      %p70 = por %p68, %p69
      %p71 = scmp.ne.s32.totalorder %s57, %s58
      %p72 = scmp.eq.s32.totalorder %s24, 1
      %p73 = por %p71, %p72
      %p75 = scmp.ne.s32.totalorder %s58, %s74
      %p76 = scmp.eq.s32.totalorder %s24, 0
      %p77 = por %p75, %p76
      %s78 = ssub.s32 %s18, %s25
      %p79 = scmp.eq.s32.totalorder %s78, 0
      %s81 = sadd.s32 %s80, 1
      %s82 = scalar_select %p79, %s80, %s81
      %p85 = pneg %p79
      %p86 = scmp.eq.s32.totalorder %s18, 1
      %p87 = por %p85, %p86
      %p88 = scmp.ne.s32.totalorder %s80, %s83
      %p89 = scmp.eq.s32.totalorder %s18, 0
      %p90 = por %p88, %p89
      %p91 = scmp.ne.s32.totalorder %s80, %s83
      %p92 = scmp.eq.s32.totalorder %s23, 1
      %p93 = por %p91, %p92
      %p94 = scmp.ne.s32.totalorder %s83, %s84
      %p95 = scmp.eq.s32.totalorder %s23, 0
      %p96 = por %p94, %p95
      %p97 = scmp.ne.s32.totalorder %s83, %s84
      %p98 = scmp.eq.s32.totalorder %s24, 1
      %p99 = por %p97, %p98
      %p101 = scmp.ne.s32.totalorder %s84, %s100
      %p102 = scmp.eq.s32.totalorder %s24, 0
      %p103 = por %p101, %p102
      %s104 = ssub.s32 %s18, %s25
      %p105 = scmp.eq.s32.totalorder %s104, 0
      %s107 = sadd.s32 %s106, 1
      %s108 = scalar_select %p105, %s106, %s107
      %p111 = pneg %p105
      %p112 = scmp.eq.s32.totalorder %s18, 1
      %p113 = por %p111, %p112
      %p114 = scmp.ne.s32.totalorder %s106, %s109
      %p115 = scmp.eq.s32.totalorder %s18, 0
      %p116 = por %p114, %p115
      %p117 = scmp.ne.s32.totalorder %s106, %s109
      %p118 = scmp.eq.s32.totalorder %s23, 1
      %p119 = por %p117, %p118
      %p120 = scmp.ne.s32.totalorder %s109, %s110
      %p121 = scmp.eq.s32.totalorder %s23, 0
      %p122 = por %p120, %p121
      %p123 = scmp.ne.s32.totalorder %s109, %s110
      %p124 = scmp.eq.s32.totalorder %s24, 1
      %p125 = por %p123, %p124
      %p127 = scmp.ne.s32.totalorder %s110, %s126
      %p128 = scmp.eq.s32.totalorder %s24, 0
      %p129 = por %p127, %p128
      %p130 = scmp.le.s32.totalorder 1, %s18
      %p131 = scmp.lt.s32.totalorder %s18, 3
      %p132 = pnand %p130, %p131
      %p133 = pneg %p132
      // Predicated region
      $region9: #{tpu_custom_call.1} parent=5 // pred_check
        _
      $region10: #{tpu_custom_call.1} parent=5 // pred_check_branch
        %135 = sbr.rel (%p132) target = $region12
      $region11: #{tpu_custom_call.1} parent=5 // pred_region
        %s136 = ssub.s32 %s18, 1
      $region12: #{tpu_custom_call.1} parent=5 // pred_fallthru
        _
      %p137 = scmp.lt.s32.totalorder %s18, 2
      // Predicated region
      $region13: #{tpu_custom_call.1} parent=5 // pred_check
        %p138 = pneg %p137
      $region14: #{tpu_custom_call.1} parent=5 // pred_check_branch
        %140 = sbr.rel (%p138) target = $region16
      $region15: #{tpu_custom_call.1} parent=5 // pred_region
        // Predicated region
        $region17: #{tpu_custom_call.1} parent=15 // pred_check
          %p141 = pneg %p38
        $region18: #{tpu_custom_call.1} parent=15 // pred_check_branch
          %143 = sbr.rel (%p141) target = $region20
        $region19: #{tpu_custom_call.1} parent=15 // pred_region
          %s144 = sand.u32 %s28, 1
          %s145 = scalar_lea.sflag [#allocation3], %s144
          %s146 = sand.u32 %s28, 1
          %s147 = smul.addr %s146, 16
          %s148 = scalar_lea.vmem [#allocation2], %s147
          %s149 = smul.u32 2, %s18
          %s151 = ssub.s32 256, 256
          %152 = vsyncadd %s145, %s151
          %s153 = smul.addr %s149, 128
          %s154 = scalar_lea.hbm %s0, %s153
          %s155 = sshll.u32 %s148, 4
          %s156 = int_to_ptr.vmem [resolvable:$true] %s155
          %161 = dma.hbm_to_vmem [thread:$0]  %s154, 256, %s156, %s145, 128, 128, 8
        $region20: #{tpu_custom_call.1} parent=15 // pred_fallthru
          _
        // Predicated region
        $region21: #{tpu_custom_call.1} parent=15 // pred_check
          %p162 = pneg %p64
        $region22: #{tpu_custom_call.1} parent=15 // pred_check_branch
          %164 = sbr.rel (%p162) target = $region24
        $region23: #{tpu_custom_call.1} parent=15 // pred_region
          %s165 = sand.u32 %s18, 1
          %s166 = scalar_lea.sflag [#allocation6], %s165
          %s167 = sand.u32 %s54, 1
          %s168 = smul.addr %s167, 16
          %s169 = scalar_lea.vmem [#allocation5], %s168
          %s170 = smul.u32 2, %s18
          %s172 = ssub.s32 256, 256
          %173 = vsyncadd %s166, %s172
          %s174 = smul.addr %s170, 128
          %s175 = scalar_lea.hbm %s1, %s174
          %s176 = sshll.u32 %s169, 4
          %s177 = int_to_ptr.vmem [resolvable:$true] %s176
          %182 = dma.hbm_to_vmem [thread:$0]  %s175, 256, %s177, %s166, 128, 128, 8
        $region24: #{tpu_custom_call.1} parent=15 // pred_fallthru
          _
        // Predicated region
        $region25: #{tpu_custom_call.1} parent=15 // pred_check
          %p183 = pneg %p90
        $region26: #{tpu_custom_call.1} parent=15 // pred_check_branch
          %185 = sbr.rel (%p183) target = $region28
        $region27: #{tpu_custom_call.1} parent=15 // pred_region
          %s186 = sand.u32 %s18, 1
          %s187 = scalar_lea.sflag [#allocation6], %s186
          %s188 = sand.u32 %s80, 1
          %s189 = smul.addr %s188, 16
          %s190 = scalar_lea.vmem [#allocation7], %s189
          %s191 = smul.u32 2, %s18
          %s193 = ssub.s32 256, 256
          %194 = vsyncadd %s187, %s193
          %s195 = smul.addr %s191, 128
          %s196 = scalar_lea.hbm %s2, %s195
          %s197 = sshll.u32 %s190, 4
          %s198 = int_to_ptr.vmem [resolvable:$true] %s197
          %203 = dma.hbm_to_vmem [thread:$0]  %s196, 256, %s198, %s187, 128, 128, 8
        $region28: #{tpu_custom_call.1} parent=15 // pred_fallthru
          _
      $region16: #{tpu_custom_call.1} parent=5 // pred_fallthru
        _
      %p204 = scmp.le.s32.totalorder 1, %s18
      %p205 = scmp.lt.s32.totalorder %s18, 3
      %p206 = pnand %p204, %p205
      %p207 = pneg %p206
      // Predicated region
      $region29: #{tpu_custom_call.1} parent=5 // pred_check
        _
      $region30: #{tpu_custom_call.1} parent=5 // pred_check_branch
        %209 = sbr.rel (%p206) target = $region32
      $region31: #{tpu_custom_call.1} parent=5 // pred_region
        %s210 = ssub.s32 %s18, 1
        %s211 = sand.u32 %s31, 1
        %s212 = scalar_lea.sflag [#allocation3], %s211
        %s213 = sand.u32 %s31, 1
        %s214 = smul.addr %s213, 16
        %s215 = scalar_lea.vmem [#allocation2], %s214
        // Predicated region
        $region33: #{tpu_custom_call.1} parent=31 // pred_check
          %p216 = pneg %p44
        $region34: #{tpu_custom_call.1} parent=31 // pred_check_branch
          %218 = sbr.rel (%p216) target = $region36
        $region35: #{tpu_custom_call.1} parent=31 // pred_region
          %219 = dma.done %s212, 256
        $region36: #{tpu_custom_call.1} parent=31 // pred_fallthru
          _
        %s220 = sand.u32 %s23, 1
        %s221 = scalar_lea.sflag [#allocation6], %s220
        %s222 = sand.u32 %s57, 1
        %s223 = smul.addr %s222, 16
        %s224 = scalar_lea.vmem [#allocation5], %s223
        // Predicated region
        $region37: #{tpu_custom_call.1} parent=31 // pred_check
          %p225 = pneg %p70
        $region38: #{tpu_custom_call.1} parent=31 // pred_check_branch
          %227 = sbr.rel (%p225) target = $region40
        $region39: #{tpu_custom_call.1} parent=31 // pred_region
          %228 = dma.done %s221, 256
        $region40: #{tpu_custom_call.1} parent=31 // pred_fallthru
          _
        %s229 = sand.u32 %s23, 1
        %s230 = scalar_lea.sflag [#allocation6], %s229
        %s231 = sand.u32 %s83, 1
        %s232 = smul.addr %s231, 16
        %s233 = scalar_lea.vmem [#allocation7], %s232
        // Predicated region
        $region41: #{tpu_custom_call.1} parent=31 // pred_check
          %p234 = pneg %p96
        $region42: #{tpu_custom_call.1} parent=31 // pred_check_branch
          %236 = sbr.rel (%p234) target = $region44
        $region43: #{tpu_custom_call.1} parent=31 // pred_region
          %237 = dma.done %s230, 256
        $region44: #{tpu_custom_call.1} parent=31 // pred_fallthru
          _
        %s238 = sand.u32 %s31, 1
        %s239 = scalar_lea.sflag [#allocation3], %s238
        %s240 = sand.u32 %s31, 1
        %s241 = smul.addr %s240, 16
        %s242 = scalar_lea.vmem [#allocation2], %s241
        %p243 = pneg %p44
        %p244 = pneg %p41
        %s245 = sand.u32 %s23, 1
        %s246 = scalar_lea.sflag [#allocation6], %s245
        %s247 = sand.u32 %s57, 1
        %s248 = smul.addr %s247, 16
        %s249 = scalar_lea.vmem [#allocation5], %s248
        %p250 = pneg %p70
        %p251 = pneg %p67
        %s252 = sand.u32 %s23, 1
        %s253 = scalar_lea.sflag [#allocation6], %s252
        %s254 = sand.u32 %s83, 1
        %s255 = smul.addr %s254, 16
        %s256 = scalar_lea.vmem [#allocation7], %s255
        %p257 = pneg %p96
        %p258 = pneg %p93
        %p259 = pneg %p122
        %p260 = pneg %p119
        %s261 = sand.u32 %s109, 1
        %s262 = scalar_lea.sflag [#allocation4], %s261
        %s263 = sand.u32 %s109, 1
        %s264 = smul.addr %s263, 8
        %s265 = scalar_lea.vmem [#allocation8], %s264
        %s266 = smul.u32 2, %s23
        %s267 = smul.u32 2, %s23
        %s268 = smul.u32 2, %s23
        %v269 = vld [vmem:[%s215] sm:$0xff]
        %v270 = vld [vmem:[%s215 + $0x8] sm:$0xff]
        %v271 = vld [vmem:[%s224] sm:$0xff]
        %v272 = vld [vmem:[%s224 + $0x8] sm:$0xff]
        %v273 = vld [vmem:[%s233] sm:$0xff]
        %v274 = vld [vmem:[%s233 + $0x8] sm:$0xff]
        %v275 = vrcp.pop %v271
        %v276 = vmul.f32 %v273, %v275
        %v277 = vrcp.pop %v272
        %v278 = vmul.f32 %v274, %v277
        %vm279 = vcmp.ne.f32.partialorder %v276, %v276
        %vm280 = vcmp.ne.f32.partialorder %v278, %v278
        %vm281 = vcmp.eq.f32.partialorder %v276, inf
        %vm282 = vcmp.eq.f32.partialorder %v278, inf
        %vm283 = vmor %vm279, %vm281
        %vm284 = vmor %vm280, %vm282
        %v285 = vsel %vm283, 0.0, %v276
        %v286 = vsel %vm284, 0.0, %v278
        %v287 = vsub.f32 %v269, %v271
        %v288 = vsub.f32 %v270, %v272
        %v289 = vmul.f32 %v287, %v285
        %v290 = vmul.f32 %v288, %v286
        %v291 = vand.u32 2147483647, %v289
        %v292 = vand.u32 2147483647, %v290
        %s293 = smul.u32 %s23, 16
        %v294 = vlaneseq
        %v295 = vshrl.u32 %v294, 7
        %v296 = vadd.s32 %v295, 8
        %v297 = vstv %s293
        %v298 = vadd.s32 %v297, %v295
        %v299 = vadd.s32 %v297, %v296
        %vm300 = vcmp.lt.s32.totalorder %v298, 25
        %vm301 = vcmp.lt.s32.totalorder %v299, 25
        %v302 = vsel %vm300, %v291, 0.0
        %v303 = vsel %vm301, %v292, 0.0
        %v304 = vadd.f32 %v302, %v303
        %305 = vst [vmem:[%s265] sm:$0xff] %v304
        %s306 = sand.u32 %s109, 1
        %s307 = scalar_lea.sflag [#allocation4], %s306
        %s308 = sand.u32 %s109, 1
        %s309 = smul.addr %s308, 8
        %s310 = scalar_lea.vmem [#allocation8], %s309
        // Predicated region
        $region45: #{tpu_custom_call.1} parent=31 // pred_check
          %p311 = pneg %p119
        $region46: #{tpu_custom_call.1} parent=31 // pred_check_branch
          %313 = sbr.rel (%p311) target = $region48
        $region47: #{tpu_custom_call.1} parent=31 // pred_region
          %s315 = ssub.s32 128, 128
          %316 = vsyncadd %s307, %s315
          %s317 = smul.addr %s23, 128
          %s318 = scalar_lea.hbm %s3, %s317
          %s320 = sshll.u32 %s310, 4
          %s321 = int_to_ptr.vmem [resolvable:$true] %s320
          %323 = dma.vmem_to_hbm [thread:$0]  %s321, 128, %s318, %s307
        $region48: #{tpu_custom_call.1} parent=31 // pred_fallthru
          _
      $region32: #{tpu_custom_call.1} parent=5 // pred_fallthru
        _
      %p324 = scmp.le.s32.totalorder 2, %s18
      // Predicated region
      $region49: #{tpu_custom_call.1} parent=5 // pred_check
        %p325 = pneg %p324
      $region50: #{tpu_custom_call.1} parent=5 // pred_check_branch
        %327 = sbr.rel (%p325) target = $region52
      $region51: #{tpu_custom_call.1} parent=5 // pred_region
        %s328 = ssub.s32 %s18, 2
        // Predicated region
        $region53: #{tpu_custom_call.1} parent=51 // pred_check
          %p329 = pneg %p125
        $region54: #{tpu_custom_call.1} parent=51 // pred_check_branch
          %331 = sbr.rel (%p329) target = $region56
        $region55: #{tpu_custom_call.1} parent=51 // pred_region
          %s332 = sand.u32 %s110, 1
          %s333 = scalar_lea.sflag [#allocation4], %s332
          %s334 = sand.u32 %s110, 1
          %s335 = smul.addr %s334, 8
          %s336 = scalar_lea.vmem [#allocation8], %s335
          %337 = dma.done %s333, 128
        $region56: #{tpu_custom_call.1} parent=51 // pred_fallthru
          _
      $region52: #{tpu_custom_call.1} parent=5 // pred_fallthru
        _
    $region6: #{tpu_custom_call.1} parent=1 // loop_footer
      %s22 = sadd.s32 1, %s18
    $region7: #{tpu_custom_call.1} parent=1 // loop_footer_branch
      %17 = sbr.rel target = $region3
    $region8: #{tpu_custom_call.1} parent=1 // loop_exit
      _
    %338 = vsyncpa [#allocation3], 1
    %s339 = scalar_lea.sflag [#allocation3], 1
    %340 = vsyncpa %s339, 1
    %341 = vsyncpa [#allocation6], 1
    %s342 = scalar_lea.sflag [#allocation6], 1
    %343 = vsyncpa %s342, 1
    %344 = vsyncpa [#allocation4], 1
    %s345 = scalar_lea.sflag [#allocation4], 1
    %346 = vsyncpa %s345, 1

</llo_original>
